<compile_context>
chip_gen: v7x
topology: tpu7x:2x2x1
jax: 0.10.0
libtpu: 0.0.40
codegen_flags: <defaults>
</compile_context>

<pallas_src>
import functools

import numpy as np
import jax
import jax.numpy as jnp
from jax import lax
from jax.experimental import pallas as pl
from jax.experimental.pallas import tpu as pltpu

# analog of cfg.DATA_LOADER.TUPLE_SIZE (1 anchor + 1 positive + (S-2) negatives)
TUPLE_SIZE = 5


def _round_up(a, b):
    return (a + b - 1) // b * b


def _align_tile_q(t):
    """Sublane-friendly anchor-tile size: multiple of 128 when large, else 16."""
    if t >= 128:
        return (t // 128) * 128
    return max(16, (t // 16) * 16)


def _pick_tile_d(dim_p):
    """Feature-chunk width (lanes) used inside the kernel."""
    for cand in (512, 256, 128):
        if dim_p % cand == 0:
            return cand
    return 128


def _tpu_defaults():
    """(target input bytes per grid step, scoped VMEM limit) for this chip."""
    try:
        vmem_cap = int(pltpu.get_tpu_info().vmem_capacity_bytes)
    except Exception:  # conservative fallback if the query is unavailable
        vmem_cap = 64 * 1024 * 1024
    if vmem_cap >= 128 * 1024 * 1024:          # v5e / v6e: 128 MiB physical VMEM
        return 12 << 20, 64 * 1024 * 1024
    return 8 << 20, 48 * 1024 * 1024           # v7x-class: 64 MiB physical VMEM


def _pick_tile_q(nq, S, dim_p, itemsize, target_bytes):
    """Anchors per grid step: ~target_bytes of input per step, aligned."""
    bytes_per_anchor = S * dim_p * itemsize
    tq = _align_tile_q(int(max(16, target_bytes // bytes_per_anchor)))
    nq16 = _round_up(nq, 16)
    tq = min(tq, nq16)
    # Prefer >= 2 grid steps so the "parallel" axis can feed both v7x cores.
    if nq16 >= 32:
        tq = min(tq, max(16, nq16 // 2))
    return _align_tile_q(tq)


def _triplet_kernel(margin, nq, S, dim_p, tile_d, x_ref, out_ref):
    """One anchor tile of whole tuples.

    x_ref  : (tile_q, S*dim_p)  row q = [anchor | positive | neg_0 ... neg_{S-3}]
    out_ref: (1, 1, 128)        per-tile partial loss, broadcast across lanes
    """
    tile_q = x_ref.shape[0]
    num_chunks = dim_p // tile_d

    # Partial squared distances, accumulated over feature (lane) chunks so the
    # live f32 temporaries stay bounded at (tile_q, tile_d).
    dist = [jnp.zeros((tile_q, 1), jnp.float32) for _ in range(S - 1)]
    for c in range(num_chunks):
        base = c * tile_d
        xa = x_ref[:, base:base + tile_d].astype(jnp.float32)
        for s in range(1, S):                       # s=1 positive, s>=2 negatives
            off = s * dim_p + base
            xo = x_ref[:, off:off + tile_d].astype(jnp.float32)
            d = xa - xo
            dist[s - 1] = dist[s - 1] + jnp.sum(d * d, axis=-1, keepdims=True)

    dist_pos = dist[0]
    hinge = jnp.zeros((tile_q, 1), jnp.float32)
    for j in range(S - 2):
        hinge = hinge + jnp.maximum(dist_pos - dist[1 + j] + margin, 0.0)

    # Padded anchors (global rows >= nq) are all-zero and would contribute
    # (S-2)*margin each; mask them before the tile reduction.
    row = pl.program_id(0) * tile_q + lax.broadcasted_iota(jnp.int32, (tile_q, 1), 0)
    hinge = jnp.where(row < nq, hinge, 0.0)

    out_ref[...] = jnp.broadcast_to(jnp.sum(hinge), (1, 1, 128)).astype(out_ref.dtype)


@functools.partial(
    jax.jit,
    static_argnames=("nq", "S", "dim_p", "nq_pad", "tile_q", "tile_d",
                     "margin", "vmem_limit"))
def _triplet_forward(x, row_idx, *, nq, S, dim_p, nq_pad, tile_q, tile_d,
                     margin, vmem_limit):
    dim = x.shape[0]
    num_tiles = nq_pad // tile_q
    if dim_p != dim:
        # Zero feature padding leaves all squared distances unchanged.
        x = jnp.pad(x, ((0, dim_p - dim), (0, 0)))
    # The single remaining layout pass: (dim, N) -> samples-major (N, dim_p).
    # TODO(synk): accept samples-major activations upstream to remove it.
    xt = x.T
    if row_idx is not None:
        # Non tuple-major labels: one fused row gather into canonical order.
        xt = jnp.take(xt, row_idx, axis=0)
    # Free reshape: one row per tuple = [anchor | positive | negatives...].
    xt = xt.reshape(nq, S * dim_p)
    if nq_pad != nq:
        xt = jnp.pad(xt, ((0, nq_pad - nq), (0, 0)))

    partials = pl.pallas_call(
        functools.partial(_triplet_kernel, margin, nq, S, dim_p, tile_d),
        out_shape=jax.ShapeDtypeStruct((num_tiles, 1, 128), jnp.float32),
        grid=(num_tiles,),
        in_specs=[pl.BlockSpec((tile_q, S * dim_p), lambda i: (i, 0))],
        out_specs=pl.BlockSpec((1, 1, 128), lambda i: (i, 0, 0)),
        compiler_params=pltpu.CompilerParams(
            dimension_semantics=("parallel",),
            vmem_limit_bytes=vmem_limit),
    )(xt)
    return jnp.sum(partials[:, 0, 0])


def triplet_loss_pallas(x, label, margin=0.1, tuple_size=TUPLE_SIZE, tile_q=None):
    """TripletLoss forward.  x: (dim, N) array; label: concrete host array of {-1,1,0}."""
    label_np = np.asarray(label)
    dim, n = x.shape
    nq = int(np.sum(label_np == -1))
    S = int(tuple_size)
    assert n == S * nq, "x.shape[1] must equal TUPLE_SIZE * nq"

    # Canonical tuple-major layout ([-1, 1, 0, ..., 0] per tuple) needs no gather.
    canonical_pattern = np.tile(np.array([-1, 1] + [0] * (S - 2), dtype=np.int64), nq)
    canonical = np.array_equal(label_np.astype(np.int64), canonical_pattern)
    row_idx = None
    if not canonical:
        a_idx = np.nonzero(label_np == -1)[0]
        p_idx = np.nonzero(label_np == 1)[0]
        n_idx = np.nonzero(label_np == 0)[0]
        assert len(p_idx) == nq and len(n_idx) == (S - 2) * nq
        rows = np.concatenate(
            [a_idx[:, None], p_idx[:, None], n_idx.reshape(nq, S - 2)], axis=1)
        row_idx = jnp.asarray(rows.reshape(-1).astype(np.int32))

    dim_p = _round_up(dim, 128)
    itemsize = np.dtype(x.dtype).itemsize
    target_bytes, vmem_limit = _tpu_defaults()
    if tile_q is None:
        tile_q = _pick_tile_q(nq, S, dim_p, itemsize, target_bytes)
    tile_q = int(tile_q)
    assert tile_q % 8 == 0
    nq_pad = _round_up(nq, tile_q)
    tile_d = _pick_tile_d(dim_p)

    return _triplet_forward(
        x, row_idx, nq=nq, S=S, dim_p=dim_p, nq_pad=nq_pad,
        tile_q=tile_q, tile_d=int(tile_d), margin=float(margin),
        vmem_limit=int(vmem_limit))


class TripletLoss:
    def __init__(self, margin=0.1):
        self.margin = float(margin)

    def __call__(self, x, label):
        return triplet_loss_pallas(x, label, margin=self.margin)

    def __repr__(self):
        return self.__class__.__name__ + "(margin={:.4f})".format(self.margin)


def _reference_loss(x, label, margin, S):
    """Direct NumPy transcription of the torch reference."""
    x = np.asarray(x, dtype=np.float64)
    label = np.asarray(label)
    xa = np.repeat(x[:, label == -1].T, S - 2, axis=0).T
    xp = np.repeat(x[:, label == 1].T, S - 2, axis=0).T
    xn = x[:, label == 0]
    dp = np.sum((xa - xp) ** 2, axis=0)
    dn = np.sum((xa - xn) ** 2, axis=0)
    return np.sum(np.maximum(dp - dn + margin, 0.0))


if __name__ == "__main__":
    key = jax.random.PRNGKey(0)
    k1, k2, k3 = jax.random.split(key, 3)
    S = TUPLE_SIZE
    loss_fn = TripletLoss(margin=0.1)

    # Test 1: canonical tuple-major labels, feature dim needing lane padding (96 -> 128).
    dim1, nq1 = 96, 4
    label1 = np.tile(np.array([-1, 1] + [0] * (S - 2), dtype=np.int32), nq1)
    x1 = jax.random.normal(k1, (dim1, S * nq1), dtype=jnp.float32)
    loss1 = jax.block_until_ready(loss_fn(x1, label1))
    ref1 = _reference_loss(np.asarray(x1), label1, 0.1, S)
    assert np.allclose(float(loss1), ref1, rtol=1e-4, atol=1e-3), (float(loss1), ref1)

    # Test 2: bf16 input, multi-tile grid with padded anchors (nq=24 -> 2 tiles of 16).
    dim2, nq2 = 128, 24
    label2 = np.tile(np.array([-1, 1] + [0] * (S - 2), dtype=np.int32), nq2)
    x2 = jax.random.normal(k2, (dim2, S * nq2), dtype=jnp.bfloat16)
    loss2 = jax.block_until_ready(loss_fn(x2, label2))
    ref2 = _reference_loss(np.asarray(x2.astype(jnp.float32)), label2, 0.1, S)
    assert np.allclose(float(loss2), ref2, rtol=1e-3, atol=1e-2), (float(loss2), ref2)

    # Test 3: non tuple-major label ordering -> row-gather fallback path.
    dim3, nq3 = 256, 6
    label3_can = np.tile(np.array([-1, 1] + [0] * (S - 2), dtype=np.int32), nq3)
    perm = np.random.RandomState(0).permutation(S * nq3)
    label3 = label3_can[perm]
    x3 = jax.random.normal(k3, (dim3, S * nq3), dtype=jnp.float32)[:, perm]
    loss3 = jax.block_until_ready(triplet_loss_pallas(x3, label3, margin=0.1))
    ref3 = _reference_loss(np.asarray(x3), label3, 0.1, S)
    assert np.allclose(float(loss3), ref3, rtol=1e-4, atol=1e-3), (float(loss3), ref3)

    print("KERNEL_OK")
</pallas_src>

<mosaic_0001>
module attributes {stable_mosaic.version = 11 : i64} {
  func.func @_triplet_kernel(%arg0: i32, %arg1: memref<16x640xf32, #tpu.memory_space<vmem>>, %arg2: memref<1x1x128xf32, #tpu.memory_space<vmem>>) attributes {dimension_semantics = [#tpu.dimension_semantics<parallel>], iteration_bounds = array<i64: 1>, scalar_prefetch = 0 : i64, scratch_operands = 0 : i64, tpu.core_type = #tpu.core_type<tc>, window_params = [{transform_indices = @transform_0, window_bounds = array<i64: 16, 640>}, {transform_indices = @transform_1, window_bounds = array<i64: 1, 1, 128>}]} {
    %cst = arith.constant 0.000000e+00 : f32
    %0 = vector.broadcast %cst : f32 to vector<16x1xf32>
    %cst_0 = arith.constant 0.000000e+00 : f32
    %1 = vector.broadcast %cst_0 : f32 to vector<16x1xf32>
    %cst_1 = arith.constant 0.000000e+00 : f32
    %2 = vector.broadcast %cst_1 : f32 to vector<16x1xf32>
    %cst_2 = arith.constant 0.000000e+00 : f32
    %3 = vector.broadcast %cst_2 : f32 to vector<16x1xf32>
    %c0 = arith.constant 0 : index
    %c0_3 = arith.constant 0 : index
    %4 = vector.load %arg1[%c0, %c0_3] : memref<16x640xf32, #tpu.memory_space<vmem>>, vector<16x128xf32>
    %c0_4 = arith.constant 0 : index
    %c128 = arith.constant 128 : index
    %5 = vector.load %arg1[%c0_4, %c128] : memref<16x640xf32, #tpu.memory_space<vmem>>, vector<16x128xf32>
    %6 = arith.subf %4, %5 : vector<16x128xf32>
    %7 = arith.mulf %6, %6 : vector<16x128xf32>
    %cst_5 = arith.constant dense<0.000000e+00> : vector<16xf32>
    %8 = vector.multi_reduction <add>, %7, %cst_5 [1] : vector<16x128xf32> to vector<16xf32>
    %9 = vector.shape_cast %8 : vector<16xf32> to vector<16x1xf32>
    %10 = arith.addf %0, %9 : vector<16x1xf32>
    %c0_6 = arith.constant 0 : index
    %c256 = arith.constant 256 : index
    %11 = vector.load %arg1[%c0_6, %c256] : memref<16x640xf32, #tpu.memory_space<vmem>>, vector<16x128xf32>
    %12 = arith.subf %4, %11 : vector<16x128xf32>
    %13 = arith.mulf %12, %12 : vector<16x128xf32>
    %cst_7 = arith.constant dense<0.000000e+00> : vector<16xf32>
    %14 = vector.multi_reduction <add>, %13, %cst_7 [1] : vector<16x128xf32> to vector<16xf32>
    %15 = vector.shape_cast %14 : vector<16xf32> to vector<16x1xf32>
    %16 = arith.addf %1, %15 : vector<16x1xf32>
    %c0_8 = arith.constant 0 : index
    %c384 = arith.constant 384 : index
    %17 = vector.load %arg1[%c0_8, %c384] : memref<16x640xf32, #tpu.memory_space<vmem>>, vector<16x128xf32>
    %18 = arith.subf %4, %17 : vector<16x128xf32>
    %19 = arith.mulf %18, %18 : vector<16x128xf32>
    %cst_9 = arith.constant dense<0.000000e+00> : vector<16xf32>
    %20 = vector.multi_reduction <add>, %19, %cst_9 [1] : vector<16x128xf32> to vector<16xf32>
    %21 = vector.shape_cast %20 : vector<16xf32> to vector<16x1xf32>
    %22 = arith.addf %2, %21 : vector<16x1xf32>
    %c0_10 = arith.constant 0 : index
    %c512 = arith.constant 512 : index
    %23 = vector.load %arg1[%c0_10, %c512] : memref<16x640xf32, #tpu.memory_space<vmem>>, vector<16x128xf32>
    %24 = arith.subf %4, %23 : vector<16x128xf32>
    %25 = arith.mulf %24, %24 : vector<16x128xf32>
    %cst_11 = arith.constant dense<0.000000e+00> : vector<16xf32>
    %26 = vector.multi_reduction <add>, %25, %cst_11 [1] : vector<16x128xf32> to vector<16xf32>
    %27 = vector.shape_cast %26 : vector<16xf32> to vector<16x1xf32>
    %28 = arith.addf %3, %27 : vector<16x1xf32>
    %cst_12 = arith.constant 0.000000e+00 : f32
    %29 = vector.broadcast %cst_12 : f32 to vector<16x1xf32>
    %30 = arith.subf %10, %16 : vector<16x1xf32>
    %cst_13 = arith.constant 1.000000e-01 : f32
    %31 = vector.broadcast %cst_13 : f32 to vector<16x1xf32>
    %32 = arith.addf %30, %31 : vector<16x1xf32>
    %cst_14 = arith.constant 0.000000e+00 : f32
    %33 = vector.broadcast %cst_14 : f32 to vector<16x1xf32>
    %34 = arith.maximumf %32, %33 : vector<16x1xf32>
    %35 = arith.addf %29, %34 : vector<16x1xf32>
    %36 = arith.subf %10, %22 : vector<16x1xf32>
    %cst_15 = arith.constant 1.000000e-01 : f32
    %37 = vector.broadcast %cst_15 : f32 to vector<16x1xf32>
    %38 = arith.addf %36, %37 : vector<16x1xf32>
    %cst_16 = arith.constant 0.000000e+00 : f32
    %39 = vector.broadcast %cst_16 : f32 to vector<16x1xf32>
    %40 = arith.maximumf %38, %39 : vector<16x1xf32>
    %41 = arith.addf %35, %40 : vector<16x1xf32>
    %42 = arith.subf %10, %28 : vector<16x1xf32>
    %cst_17 = arith.constant 1.000000e-01 : f32
    %43 = vector.broadcast %cst_17 : f32 to vector<16x1xf32>
    %44 = arith.addf %42, %43 : vector<16x1xf32>
    %cst_18 = arith.constant 0.000000e+00 : f32
    %45 = vector.broadcast %cst_18 : f32 to vector<16x1xf32>
    %46 = arith.maximumf %44, %45 : vector<16x1xf32>
    %47 = arith.addf %41, %46 : vector<16x1xf32>
    %c16_i32 = arith.constant 16 : i32
    %48 = arith.muli %arg0, %c16_i32 : i32
    %49 = tpu.iota {dimensions = array<i32: 0>} : vector<16x1xi32>
    %50 = vector.broadcast %48 : i32 to vector<16x1xi32>
    %51 = arith.addi %50, %49 : vector<16x1xi32>
    %c4_i32 = arith.constant 4 : i32
    %52 = vector.broadcast %c4_i32 : i32 to vector<16x1xi32>
    %53 = arith.cmpi slt, %51, %52 : vector<16x1xi32>
    %cst_19 = arith.constant 0.000000e+00 : f32
    %54 = vector.broadcast %cst_19 : f32 to vector<16x1xf32>
    %55 = arith.select %53, %47, %54 : vector<16x1xi1>, vector<16x1xf32>
    %56 = vector.shape_cast %55 : vector<16x1xf32> to vector<1x16x1xf32>
    %cst_20 = arith.constant dense<0.000000e+00> : vector<1xf32>
    %57 = vector.multi_reduction <add>, %56, %cst_20 [1, 2] : vector<1x16x1xf32> to vector<1xf32>
    %58 = vector.shape_cast %57 : vector<1xf32> to vector<1x1x1xf32>
    %59 = vector.extract %58[0, 0, 0] : f32 from vector<1x1x1xf32>
    %60 = vector.broadcast %59 : f32 to vector<1x1x128xf32>
    %c0_21 = arith.constant 0 : index
    %c0_22 = arith.constant 0 : index
    %c0_23 = arith.constant 0 : index
    %61 = vector.load %arg2[%c0_21, %c0_22, %c0_23] : memref<1x1x128xf32, #tpu.memory_space<vmem>>, vector<1x1x128xf32>
    tpu.vector_store %arg2[%c0_21, %c0_22, %c0_23], %60 {strides = array<i32>} : memref<1x1x128xf32, #tpu.memory_space<vmem>>, vector<1x1x128xf32>,
    return
  }
  func.func @transform_0(%arg0: i32) -> (i32, i32) {
    %c0_i32 = arith.constant 0 : i32
    %c0_i32_0 = arith.constant 0 : i32
    return %arg0, %c0_i32 : i32, i32
  }
  func.func @transform_1(%arg0: i32) -> (i32, i32, i32) {
    %c0_i32 = arith.constant 0 : i32
    %c0_i32_0 = arith.constant 0 : i32
    %c0_i32_1 = arith.constant 0 : i32
    return %arg0, %c0_i32, %c0_i32_0 : i32, i32, i32
  }
}

</mosaic_0001>

<llo_original>
// kernel: _triplet_forward.1
$region0: #{_triplet_forward.1}
  #allocation0 [shape = 'u32[]', space=smem, size = 0x4, offset = 0x4, fixed_abs, tag = 'smem constant byte address 0x4 - core index']
  #allocation1 [shape = 'u32[144,128]{1,0:T(1,128)}', space=vmem, size = 0x12000, scoped, tag = 'internal scratch']
  %s0 = inlined_call_operand.vmem [shape: f32[16,640], index: 0, kind: input, shape index: {}]
  %s1 = inlined_call_operand.hbm [shape: f32[1,1,128], index: 1, kind: output, shape index: {}]
  %s2 = sld [smem:[#allocation0]]
  $region14: #{_triplet_forward.1} parent=0
    _
  %s4 = ssub.s32 1, %s2
  %s5 = scalar_select 0, %s4, %s2
  $region1: #{_triplet_forward.1} parent=0
    #allocation2 [shape = 'u8[512]{0}', space=vmem, size = 0x400, scoped, tag = 'output window, operand 0, single buffered']
    #allocation3 [shape = 's32[1]{0}', space=sflag, size = 0x4, scoped, tag = 'scoped memory for _triplet_forward.1']
    %6 = vsyncpa [#allocation3], 0
    // Predicated region
    $region2: #{_triplet_forward.1} parent=1 // pred_check
      _
    $region3: #{_triplet_forward.1} parent=1 // pred_check_branch
      %8 = sbr.rel (0) target = $region5
    $region4: #{_triplet_forward.1} parent=1 // pred_region
      _
    $region5: #{_triplet_forward.1} parent=1 // pred_fallthru
      _
    %v9 = vld [vmem:[%s0] sm:$0xff]
    %v10 = vld [vmem:[%s0 + $0x28] sm:$0xff]
    %v11 = vld [vmem:[%s0 + $0x8] sm:$0xff]
    %v12 = vld [vmem:[%s0 + $0x30] sm:$0xff]
    %v13 = vsub.f32 %v9, %v11
    %v14 = vsub.f32 %v10, %v12
    %v15 = vmul.f32 %v13, %v13
    %v16 = vmul.f32 %v14, %v14
    %17 = vadd.xlane.f32.xlu0 %v15
    %v18 = vpop.xlane.xlu0 %17
    %19 = vadd.xlane.f32.xlu0 %v16
    %v20 = vpop.xlane.xlu0 %19
    %v21 = vadd.f32 %v18, 0.0
    %v22 = vadd.f32 %v20, 0.0
    %v23 = vld [vmem:[%s0 + $0x10] sm:$0xff]
    %v24 = vld [vmem:[%s0 + $0x38] sm:$0xff]
    %v25 = vsub.f32 %v9, %v23
    %v26 = vsub.f32 %v10, %v24
    %v27 = vmul.f32 %v25, %v25
    %v28 = vmul.f32 %v26, %v26
    %29 = vadd.xlane.f32.xlu0 %v27
    %v30 = vpop.xlane.xlu0 %29
    %31 = vadd.xlane.f32.xlu0 %v28
    %v32 = vpop.xlane.xlu0 %31
    %v33 = vadd.f32 %v30, 0.0
    %v34 = vadd.f32 %v32, 0.0
    %v35 = vld [vmem:[%s0 + $0x18] sm:$0xff]
    %v36 = vld [vmem:[%s0 + $0x40] sm:$0xff]
    %v37 = vsub.f32 %v9, %v35
    %v38 = vsub.f32 %v10, %v36
    %v39 = vmul.f32 %v37, %v37
    %v40 = vmul.f32 %v38, %v38
    %41 = vadd.xlane.f32.xlu0 %v39
    %v42 = vpop.xlane.xlu0 %41
    %43 = vadd.xlane.f32.xlu0 %v40
    %v44 = vpop.xlane.xlu0 %43
    %v45 = vadd.f32 %v42, 0.0
    %v46 = vadd.f32 %v44, 0.0
    %v47 = vld [vmem:[%s0 + $0x20] sm:$0xff]
    %v48 = vld [vmem:[%s0 + $0x48] sm:$0xff]
    %v49 = vsub.f32 %v9, %v47
    %v50 = vsub.f32 %v10, %v48
    %v51 = vmul.f32 %v49, %v49
    %v52 = vmul.f32 %v50, %v50
    %53 = vadd.xlane.f32.xlu0 %v51
    %v54 = vpop.xlane.xlu0 %53
    %55 = vadd.xlane.f32.xlu0 %v52
    %v56 = vpop.xlane.xlu0 %55
    %v57 = vadd.f32 %v54, 0.0
    %v58 = vadd.f32 %v56, 0.0
    %v59 = vsub.f32 %v21, %v33
    %v60 = vsub.f32 %v22, %v34
    %v61 = vadd.f32 %v59, 0.1
    %v62 = vadd.f32 %v60, 0.1
    %v63 = vmax.f32 %v61, 0.0
    %v64 = vmax.f32 %v62, 0.0
    %v65 = vadd.f32 %v63, 0.0
    %v66 = vadd.f32 %v64, 0.0
    %v67 = vsub.f32 %v21, %v45
    %v68 = vsub.f32 %v22, %v46
    %v69 = vadd.f32 %v67, 0.1
    %v70 = vadd.f32 %v68, 0.1
    %v71 = vmax.f32 %v69, 0.0
    %v72 = vmax.f32 %v70, 0.0
    %v73 = vadd.f32 %v65, %v71
    %v74 = vadd.f32 %v66, %v72
    %v75 = vsub.f32 %v21, %v57
    %v76 = vsub.f32 %v22, %v58
    %v77 = vadd.f32 %v75, 0.1
    %v78 = vadd.f32 %v76, 0.1
    %v79 = vmax.f32 %v77, 0.0
    %v80 = vmax.f32 %v78, 0.0
    %v81 = vadd.f32 %v73, %v79
    %v82 = vadd.f32 %v74, %v80
    %s83 = smul.u32 0, 16
    %v84 = vlaneseq
    %v85 = vshrl.u32 %v84, 7
    %v86 = vadd.s32 %v85, 8
    %v87 = vstv %s83
    %v88 = vadd.s32 %v87, %v85
    %v89 = vadd.s32 %v87, %v86
    %vm90 = vcmp.lt.s32.totalorder %v88, 4
    %vm91 = vcmp.lt.s32.totalorder %v89, 4
    %v92 = vsel %vm90, %v81, 0.0
    %v93 = vsel %vm91, %v82, 0.0
    %vm94 = vcmask 7168
    %v95 = vsel %vm94, %v92, 0.0
    %v96 = vsel %vm94, %v93, 0.0
    %v97 = vadd.f32 %v95, %v96
    %98 = vadd.xlane.f32.xlu0 %v97
    %v99 = vpop.xlane.xlu0 %98
    %v100 = vrot.slane %v99, 4
    %v101 = vadd.f32 %v99, %v100
    %v102 = vrot.slane %v101, 2
    %v103 = vadd.f32 %v101, %v102
    %v104 = vrot.slane %v103, 1
    %v105 = vadd.f32 %v103, %v104
    %s106 = vtos %v105
    %v107 = vstv %s106
    %108 = vst [vmem:[#allocation2] sm:$0x1] %v107
    // Predicated region
    $region6: #{_triplet_forward.1} parent=1 // pred_check
      _
    $region7: #{_triplet_forward.1} parent=1 // pred_check_branch
      %110 = sbr.rel (0) target = $region9
    $region8: #{_triplet_forward.1} parent=1 // pred_region
      %s112 = ssub.s32 16, 16
      %113 = vsyncadd [#allocation3], %s112
      %s115 = sshll.u32 [#allocation2], 4
      %s116 = int_to_ptr.vmem [resolvable:$true] %s115
      %118 = dma.vmem_to_hbm [thread:$0]  %s116, 16, %s1, [#allocation3]
    $region9: #{_triplet_forward.1} parent=1 // pred_fallthru
      _
    // Predicated region
    $region10: #{_triplet_forward.1} parent=1 // pred_check
      _
    $region11: #{_triplet_forward.1} parent=1 // pred_check_branch
      %120 = sbr.rel (0) target = $region13
    $region12: #{_triplet_forward.1} parent=1 // pred_region
      %121 = dma.done [#allocation3], 16
    $region13: #{_triplet_forward.1} parent=1 // pred_fallthru
      _
    %122 = vsyncpa [#allocation3], 1

</llo_original>
